<compile_context>
chip_gen: v6e
topology: v6e:2x2x1
jax: 0.10.0
libtpu: 0.0.40
codegen_flags: <defaults>
</compile_context>

<pallas_src>
import jax
import jax.numpy as jnp
from jax.experimental import pallas as pl
from jax.experimental.pallas import tpu as pltpu

LANE = 128
SUBLANE_BF16 = 16
_NEG_BIG = -1e30  # effectively -inf for f32 softmax masking (exp underflows to 0)


def _round_up(n, m):
    return ((n + m - 1) // m) * m


# ----------------------------------------------------------------------------- kernel
def _make_kernel(n_splits):
    def lol_mlp_kernel(x_ref, w1_ref, b1_ref, w2_ref, b2_ref, wc_ref, bc_ref, out_ref):
        """Fused forward for one batch tile.

        x_ref:  (TB, Dp)  f32/bf16 batch tile (pipelined over the grid; cast in-body)
        w*_ref: bf16 padded weights (constant block, single-buffered, VMEM resident)
        b*_ref: (1, N)    f32 padded biases (bc padded columns carry -1e30 => mask)
        out_ref:(TB, Cp)  bf16 lane-dense padded class axis
        """
        tb = x_ref.shape[0]
        hs = tb // n_splits

        w1 = w1_ref[...]
        w2 = w2_ref[...]
        wc = wc_ref[...]
        b1 = b1_ref[...]
        b2 = b2_ref[...]
        bc = bc_ref[...]

        # Independent half-tiles: the VPU/EUP epilogue of one half overlaps the MXU
        # matmuls of the other (static unroll; the LLO scheduler interleaves them).
        for h in range(n_splits):
            rows = pl.ds(h * hs, hs)
            x = x_ref[rows, :].astype(jnp.bfloat16)

            h1 = jnp.dot(x, w1, preferred_element_type=jnp.float32) + b1
            h1 = jnp.maximum(h1, 0.0).astype(jnp.bfloat16)

            # dropout(p=0.1) == identity in inference mode
            h2 = jnp.dot(h1, w2, preferred_element_type=jnp.float32) + b2
            h2 = jnp.maximum(h2, 0.0).astype(jnp.bfloat16)

            # Padded Wc columns are zero and padded bc columns are -1e30, so padded
            # logits are -1e30 and vanish in the softmax — no explicit mask needed.
            logits = jnp.dot(h2, wc, preferred_element_type=jnp.float32) + bc

            m = jnp.max(logits, axis=-1, keepdims=True)
            e = jnp.exp(logits - m)
            inv = pl.reciprocal(jnp.sum(e, axis=-1, keepdims=True), approx=True)
            out_ref[rows, :] = (e * inv).astype(out_ref.dtype)

    return lol_mlp_kernel


# ----------------------------------------------------------------------------- params
def init_params(key, data_size, num_classes=2):
    """nn.Linear-style uniform(-1/sqrt(fan_in), 1/sqrt(fan_in)) init.

    Weights are (in, out) (transposed vs PyTorch) so the kernel computes y = x @ W + b.
    Weights are bf16 and zero-padded to 128-lane-aligned shapes; biases stay f32.
    The classifier bias has -1e30 in its padded columns (softmax mask folded in) —
    valid only because the padded Wc columns are exactly zero by construction below.
    """
    dp = _round_up(data_size, LANE)
    cp = _round_up(num_classes, LANE)
    ks = jax.random.split(key, 6)

    def linear(kw, kb, fan_in, fan_out, fan_in_p, fan_out_p):
        bound = 1.0 / jnp.sqrt(jnp.float32(fan_in))
        w = jax.random.uniform(kw, (fan_in, fan_out), jnp.float32, -bound, bound)
        b = jax.random.uniform(kb, (1, fan_out), jnp.float32, -bound, bound)
        w_p = jnp.zeros((fan_in_p, fan_out_p), jnp.float32).at[:fan_in, :fan_out].set(w)
        b_p = jnp.zeros((1, fan_out_p), jnp.float32).at[:, :fan_out].set(b)
        return w_p.astype(jnp.bfloat16), b_p

    w1, b1 = linear(ks[0], ks[1], data_size, data_size, dp, dp)
    w2, b2 = linear(ks[2], ks[3], data_size, data_size, dp, dp)
    wc, bc = linear(ks[4], ks[5], data_size, num_classes, dp, cp)
    bc = bc.at[:, num_classes:].set(_NEG_BIG)   # fold class-padding mask into the bias
    return (w1, b1, w2, b2, wc, bc)


# ----------------------------------------------------------------------------- wrapper
def _physical_vmem_bytes():
    try:
        return int(pltpu.get_tpu_info().vmem_capacity_bytes)
    except Exception:
        return 64 << 20  # conservative: smallest per-core VMEM (v7x = 64 MiB/TC)


def _vmem_needed(tb, dp, cp, x_bytes):
    weights = (2 * dp * dp + dp * cp) * 2          # bf16, single-buffered (Buffered(1))
    biases = (2 * dp + cp) * 4                     # f32
    tiles = 2 * tb * dp * x_bytes + 2 * tb * cp * 2  # double-buffered x / bf16 out tiles
    interm = 12 * tb * dp + 12 * tb * cp           # live f32/bf16 h1,h2,logits,e values
    return weights + biases + tiles + interm + (2 << 20)


def _pick_tb(batch, block_batch):
    if batch <= block_batch:
        tb = _round_up(batch, SUBLANE_BF16)
    else:
        # Divisor-aware: minimize padded-row waste, tie-break toward the largest tile.
        candidates = [c for c in (512, 256, 128) if c <= max(block_batch, 128)] or [128]
        tb = min(candidates, key=lambda t: (_round_up(batch, t) - batch, -t))
    # v7x megacore: prefer >= 2 grid steps when halving tb adds no batch padding.
    if _round_up(batch, tb) // tb < 2 and tb > SUBLANE_BF16:
        half = _round_up(tb // 2, SUBLANE_BF16)
        if (_round_up(batch, half) == _round_up(batch, tb)
                and _round_up(batch, half) // half >= 2):
            tb = half
    return tb


def lol_model_forward(x, params, *, num_classes=2, block_batch=512):
    """Pads x (only when needed), runs the gridded fused kernel, slices real output."""
    w1, b1, w2, b2, wc, bc = params
    batch, data_size = x.shape
    dp = w1.shape[0]   # padded feature dim (multiple of 128)
    cp = wc.shape[1]   # padded class dim (128)

    vmem_cap = _physical_vmem_bytes() - (8 << 20)   # leave compiler headroom

    # Residency check: the fused design needs both dp x dp weights VMEM-resident.
    if _vmem_needed(SUBLANE_BF16, dp, cp, 2) > vmem_cap:
        # TODO(synk): tile the hidden dimension instead of failing here.
        raise NotImplementedError(
            f"data_size={data_size} (padded {dp}) too large for fully-resident weights "
            f"on this chip's VMEM")

    tb = _pick_tb(batch, block_batch)
    batch_p = _round_up(batch, tb)
    pad_free = (batch_p == batch) and (dp == data_size)
    x_bytes = x.dtype.itemsize if pad_free else 2

    # Shrink the batch tile if weights + tiles + intermediates overshoot VMEM.
    while _vmem_needed(tb, dp, cp, x_bytes) > vmem_cap and tb > SUBLANE_BF16:
        tb = max(SUBLANE_BF16, _round_up(tb // 2, SUBLANE_BF16))
        batch_p = _round_up(batch, tb)
        pad_free = (batch_p == batch) and (dp == data_size)
        x_bytes = x.dtype.itemsize if pad_free else 2

    if pad_free:
        x_in = x  # no extra HBM pass; kernel casts to bf16 in-body
    else:
        # Zero-pad: extra rows/features multiply only zero weight rows => exact result.
        x_in = jnp.zeros((batch_p, dp), jnp.bfloat16).at[:batch, :data_size].set(
            x.astype(jnp.bfloat16))

    n_splits = 2 if tb % (2 * SUBLANE_BF16) == 0 else 1
    grid = (batch_p // tb,)
    vmem_limit = int(min(max(_vmem_needed(tb, dp, cp, x_bytes), 16 << 20), vmem_cap))

    def call(single_buffer_weights):
        const_kwargs = (
            dict(pipeline_mode=pl.Buffered(1)) if single_buffer_weights else {})

        def const_spec(shape):
            return pl.BlockSpec(shape, lambda i: (0, 0), **const_kwargs)

        return pl.pallas_call(
            _make_kernel(n_splits),
            out_shape=jax.ShapeDtypeStruct((batch_p, cp), jnp.bfloat16),
            grid_spec=pltpu.PrefetchScalarGridSpec(
                num_scalar_prefetch=0,
                grid=grid,
                in_specs=[
                    pl.BlockSpec((tb, dp), lambda i: (i, 0)),  # x: tiled over batch
                    const_spec((dp, dp)),                      # W1 (resident)
                    const_spec((1, dp)),                       # b1
                    const_spec((dp, dp)),                      # W2 (resident)
                    const_spec((1, dp)),                       # b2
                    const_spec((dp, cp)),                      # Wc (resident)
                    const_spec((1, cp)),                       # bc (-1e30 padded cols)
                ],
                out_specs=pl.BlockSpec((tb, cp), lambda i: (i, 0)),
            ),
            compiler_params=pltpu.CompilerParams(
                dimension_semantics=("parallel",),
                vmem_limit_bytes=vmem_limit,
            ),
        )(x_in, w1, b1, w2, b2, wc, bc)

    try:
        out_p = jax.block_until_ready(call(True))
    except Exception:
        # Fallback if single-buffering constant blocks is unsupported in this build.
        out_p = call(False)

    return out_p[:batch, :num_classes]


# ----------------------------------------------------------------------------- reference
def reference_forward(x, params, data_size, num_classes):
    """Pure-JAX reference matching the kernel's bf16-weight math with f32 accumulation."""
    w1, b1, w2, b2, wc, bc = params
    w1 = w1[:data_size, :data_size].astype(jnp.float32)
    b1 = b1[:, :data_size]
    w2 = w2[:data_size, :data_size].astype(jnp.float32)
    b2 = b2[:, :data_size]
    wc = wc[:data_size, :num_classes].astype(jnp.float32)
    bc = bc[:, :num_classes]

    xb = x.astype(jnp.bfloat16).astype(jnp.float32)
    h1 = jnp.maximum(xb @ w1 + b1, 0.0).astype(jnp.bfloat16).astype(jnp.float32)
    h2 = jnp.maximum(h1 @ w2 + b2, 0.0).astype(jnp.bfloat16).astype(jnp.float32)
    logits = h2 @ wc + bc
    return jax.nn.softmax(logits, axis=1)


if __name__ == "__main__":
    data_size = 32
    batch = 8
    num_classes = 2

    key = jax.random.PRNGKey(0)
    kx, kp = jax.random.split(key)

    x = jax.random.normal(kx, (batch, data_size), dtype=jnp.float32)
    params = init_params(kp, data_size, num_classes)

    out = lol_model_forward(x, params, num_classes=num_classes)
    out = jax.block_until_ready(out)

    ref = reference_forward(x, params, data_size, num_classes)
    out_f32 = out.astype(jnp.float32)

    assert out.shape == (batch, num_classes)
    assert bool(jnp.all(jnp.isfinite(out_f32))), "non-finite output"
    # bf16 probabilities + approx reciprocal => slightly looser tolerance than f32.
    assert jnp.allclose(out_f32, ref, atol=1e-2, rtol=1e-2), (
        f"mismatch vs reference, max abs diff = {jnp.max(jnp.abs(out_f32 - ref))}")
    assert jnp.allclose(out_f32.sum(axis=1), 1.0, atol=2e-2), "rows not ~normalized"

    print("KERNEL_OK")
</pallas_src>

<mosaic_0001>
module attributes {stable_mosaic.version = 11 : i64} {
  func.func @lol_mlp_kernel(%arg0: i32, %arg1: memref<16x128xbf16, #tpu.memory_space<vmem>>, %arg2: memref<128x128xbf16, #tpu.memory_space<vmem>>, %arg3: memref<1x128xf32, #tpu.memory_space<vmem>>, %arg4: memref<128x128xbf16, #tpu.memory_space<vmem>>, %arg5: memref<1x128xf32, #tpu.memory_space<vmem>>, %arg6: memref<128x128xbf16, #tpu.memory_space<vmem>>, %arg7: memref<1x128xf32, #tpu.memory_space<vmem>>, %arg8: memref<16x128xbf16, #tpu.memory_space<vmem>>) attributes {dimension_semantics = [#tpu.dimension_semantics<parallel>], iteration_bounds = array<i64: 1>, scalar_prefetch = 0 : i64, scratch_operands = 0 : i64, tpu.core_type = #tpu.core_type<tc>, window_params = [{transform_indices = @transform_0, window_bounds = array<i64: 16, 128>}, {pipeline_mode = #tpu.pipeline_mode<synchronous>, transform_indices = @transform_1, window_bounds = array<i64: 128, 128>}, {pipeline_mode = #tpu.pipeline_mode<synchronous>, transform_indices = @transform_2, window_bounds = array<i64: 1, 128>}, {pipeline_mode = #tpu.pipeline_mode<synchronous>, transform_indices = @transform_3, window_bounds = array<i64: 128, 128>}, {pipeline_mode = #tpu.pipeline_mode<synchronous>, transform_indices = @transform_4, window_bounds = array<i64: 1, 128>}, {pipeline_mode = #tpu.pipeline_mode<synchronous>, transform_indices = @transform_5, window_bounds = array<i64: 128, 128>}, {pipeline_mode = #tpu.pipeline_mode<synchronous>, transform_indices = @transform_6, window_bounds = array<i64: 1, 128>}, {transform_indices = @transform_7, window_bounds = array<i64: 16, 128>}]} {
    %c0 = arith.constant 0 : index
    %c0_0 = arith.constant 0 : index
    %0 = vector.load %arg2[%c0, %c0_0] : memref<128x128xbf16, #tpu.memory_space<vmem>>, vector<128x128xbf16>
    %c0_1 = arith.constant 0 : index
    %c0_2 = arith.constant 0 : index
    %1 = vector.load %arg4[%c0_1, %c0_2] : memref<128x128xbf16, #tpu.memory_space<vmem>>, vector<128x128xbf16>
    %c0_3 = arith.constant 0 : index
    %c0_4 = arith.constant 0 : index
    %2 = vector.load %arg6[%c0_3, %c0_4] : memref<128x128xbf16, #tpu.memory_space<vmem>>, vector<128x128xbf16>
    %c0_5 = arith.constant 0 : index
    %c0_6 = arith.constant 0 : index
    %3 = vector.load %arg3[%c0_5, %c0_6] : memref<1x128xf32, #tpu.memory_space<vmem>>, vector<1x128xf32>
    %c0_7 = arith.constant 0 : index
    %c0_8 = arith.constant 0 : index
    %4 = vector.load %arg5[%c0_7, %c0_8] : memref<1x128xf32, #tpu.memory_space<vmem>>, vector<1x128xf32>
    %c0_9 = arith.constant 0 : index
    %c0_10 = arith.constant 0 : index
    %5 = vector.load %arg7[%c0_9, %c0_10] : memref<1x128xf32, #tpu.memory_space<vmem>>, vector<1x128xf32>
    %c0_11 = arith.constant 0 : index
    %c0_12 = arith.constant 0 : index
    %6 = vector.load %arg1[%c0_11, %c0_12] : memref<16x128xbf16, #tpu.memory_space<vmem>>, vector<16x128xbf16>
    %cst = arith.constant dense<0.000000e+00> : vector<16x128xf32>
    %7 = tpu.matmul %6, %0, %cst {dimension_numbers = #tpu.dot_dimension_numbers<[1], [0], [0], [1], [0, 0, 1, 1], [], []>} : vector<16x128xbf16>, vector<128x128xbf16>, vector<16x128xf32> -> vector<16x128xf32>
    %8 = vector.broadcast %3 : vector<1x128xf32> to vector<16x128xf32>
    %9 = arith.addf %7, %8 : vector<16x128xf32>
    %cst_13 = arith.constant 0.000000e+00 : f32
    %10 = vector.broadcast %cst_13 : f32 to vector<16x128xf32>
    %11 = arith.maximumf %9, %10 : vector<16x128xf32>
    %12 = arith.truncf %11 : vector<16x128xf32> to vector<16x128xbf16>
    %cst_14 = arith.constant dense<0.000000e+00> : vector<16x128xf32>
    %13 = tpu.matmul %12, %1, %cst_14 {dimension_numbers = #tpu.dot_dimension_numbers<[1], [0], [0], [1], [0, 0, 1, 1], [], []>} : vector<16x128xbf16>, vector<128x128xbf16>, vector<16x128xf32> -> vector<16x128xf32>
    %14 = vector.broadcast %4 : vector<1x128xf32> to vector<16x128xf32>
    %15 = arith.addf %13, %14 : vector<16x128xf32>
    %cst_15 = arith.constant 0.000000e+00 : f32
    %16 = vector.broadcast %cst_15 : f32 to vector<16x128xf32>
    %17 = arith.maximumf %15, %16 : vector<16x128xf32>
    %18 = arith.truncf %17 : vector<16x128xf32> to vector<16x128xbf16>
    %cst_16 = arith.constant dense<0.000000e+00> : vector<16x128xf32>
    %19 = tpu.matmul %18, %2, %cst_16 {dimension_numbers = #tpu.dot_dimension_numbers<[1], [0], [0], [1], [0, 0, 1, 1], [], []>} : vector<16x128xbf16>, vector<128x128xbf16>, vector<16x128xf32> -> vector<16x128xf32>
    %20 = vector.broadcast %5 : vector<1x128xf32> to vector<16x128xf32>
    %21 = arith.addf %19, %20 : vector<16x128xf32>
    %cst_17 = arith.constant dense<0xFF800000> : vector<16xf32>
    %22 = vector.multi_reduction <maximumf>, %21, %cst_17 [1] : vector<16x128xf32> to vector<16xf32>
    %23 = vector.shape_cast %22 : vector<16xf32> to vector<16x1xf32>
    %24 = vector.broadcast %23 : vector<16x1xf32> to vector<16x128xf32>
    %25 = arith.subf %21, %24 : vector<16x128xf32>
    %26 = math.exp %25 : vector<16x128xf32>
    %cst_18 = arith.constant dense<0.000000e+00> : vector<16xf32>
    %27 = vector.multi_reduction <add>, %26, %cst_18 [1] : vector<16x128xf32> to vector<16xf32>
    %28 = vector.shape_cast %27 : vector<16xf32> to vector<16x1xf32>
    %29 = tpu.reciprocal %28 {approx = true} : vector<16x1xf32> -> vector<16x1xf32>
    %30 = vector.broadcast %29 : vector<16x1xf32> to vector<16x128xf32>
    %31 = arith.mulf %26, %30 : vector<16x128xf32>
    %32 = arith.truncf %31 : vector<16x128xf32> to vector<16x128xbf16>
    %c0_19 = arith.constant 0 : index
    %c0_20 = arith.constant 0 : index
    %33 = vector.load %arg8[%c0_19, %c0_20] : memref<16x128xbf16, #tpu.memory_space<vmem>>, vector<16x128xbf16>
    tpu.vector_store %arg8[%c0_19, %c0_20], %32 {strides = array<i32>} : memref<16x128xbf16, #tpu.memory_space<vmem>>, vector<16x128xbf16>,
    return
  }
  func.func @transform_0(%arg0: i32) -> (i32, i32) {
    %c0_i32 = arith.constant 0 : i32
    %c0_i32_0 = arith.constant 0 : i32
    return %arg0, %c0_i32 : i32, i32
  }
  func.func @transform_1(%arg0: i32) -> (i32, i32) {
    %c0_i32 = arith.constant 0 : i32
    %c0_i32_0 = arith.constant 0 : i32
    %c0_i32_1 = arith.constant 0 : i32
    return %c0_i32, %c0_i32_0 : i32, i32
  }
  func.func @transform_2(%arg0: i32) -> (i32, i32) {
    %c0_i32 = arith.constant 0 : i32
    %c0_i32_0 = arith.constant 0 : i32
    %c0_i32_1 = arith.constant 0 : i32
    return %c0_i32, %c0_i32_0 : i32, i32
  }
  func.func @transform_3(%arg0: i32) -> (i32, i32) {
    %c0_i32 = arith.constant 0 : i32
    %c0_i32_0 = arith.constant 0 : i32
    %c0_i32_1 = arith.constant 0 : i32
    return %c0_i32, %c0_i32_0 : i32, i32
  }
  func.func @transform_4(%arg0: i32) -> (i32, i32) {
    %c0_i32 = arith.constant 0 : i32
    %c0_i32_0 = arith.constant 0 : i32
    %c0_i32_1 = arith.constant 0 : i32
    return %c0_i32, %c0_i32_0 : i32, i32
  }
  func.func @transform_5(%arg0: i32) -> (i32, i32) {
    %c0_i32 = arith.constant 0 : i32
    %c0_i32_0 = arith.constant 0 : i32
    %c0_i32_1 = arith.constant 0 : i32
    return %c0_i32, %c0_i32_0 : i32, i32
  }
  func.func @transform_6(%arg0: i32) -> (i32, i32) {
    %c0_i32 = arith.constant 0 : i32
    %c0_i32_0 = arith.constant 0 : i32
    %c0_i32_1 = arith.constant 0 : i32
    return %c0_i32, %c0_i32_0 : i32, i32
  }
  func.func @transform_7(%arg0: i32) -> (i32, i32) {
    %c0_i32 = arith.constant 0 : i32
    %c0_i32_0 = arith.constant 0 : i32
    return %arg0, %c0_i32 : i32, i32
  }
}

module attributes {stable_mosaic.version = 11 : i64} {
  func.func @lol_mlp_kernel(%arg0: i32, %arg1: memref<16x128xbf16, #tpu.memory_space<vmem>>, %arg2: memref<128x128xbf16, #tpu.memory_space<vmem>>, %arg3: memref<1x128xf32, #tpu.memory_space<vmem>>, %arg4: memref<128x128xbf16, #tpu.memory_space<vmem>>, %arg5: memref<1x128xf32, #tpu.memory_space<vmem>>, %arg6: memref<128x128xbf16, #tpu.memory_space<vmem>>, %arg7: memref<1x128xf32, #tpu.memory_space<vmem>>, %arg8: memref<16x128xbf16, #tpu.memory_space<vmem>>) attributes {dimension_semantics = [#tpu.dimension_semantics<parallel>], iteration_bounds = array<i64: 1>, scalar_prefetch = 0 : i64, scratch_operands = 0 : i64, tpu.core_type = #tpu.core_type<tc>, window_params = [{transform_indices = @transform_0, window_bounds = array<i64: 16, 128>}, {pipeline_mode = #tpu.pipeline_mode<synchronous>, transform_indices = @transform_1, window_bounds = array<i64: 128, 128>}, {pipeline_mode = #tpu.pipeline_mode<synchronous>, transform_indices = @transform_2, window_bounds = array<i64: 1, 128>}, {pipeline_mode = #tpu.pipeline_mode<synchronous>, transform_indices = @transform_3, window_bounds = array<i64: 128, 128>}, {pipeline_mode = #tpu.pipeline_mode<synchronous>, transform_indices = @transform_4, window_bounds = array<i64: 1, 128>}, {pipeline_mode = #tpu.pipeline_mode<synchronous>, transform_indices = @transform_5, window_bounds = array<i64: 128, 128>}, {pipeline_mode = #tpu.pipeline_mode<synchronous>, transform_indices = @transform_6, window_bounds = array<i64: 1, 128>}, {transform_indices = @transform_7, window_bounds = array<i64: 16, 128>}]} {
    %c0 = arith.constant 0 : index
    %c0_0 = arith.constant 0 : index
    %0 = vector.load %arg2[%c0, %c0_0] : memref<128x128xbf16, #tpu.memory_space<vmem>>, vector<128x128xbf16>
    %c0_1 = arith.constant 0 : index
    %c0_2 = arith.constant 0 : index
    %1 = vector.load %arg4[%c0_1, %c0_2] : memref<128x128xbf16, #tpu.memory_space<vmem>>, vector<128x128xbf16>
    %c0_3 = arith.constant 0 : index
    %c0_4 = arith.constant 0 : index
    %2 = vector.load %arg6[%c0_3, %c0_4] : memref<128x128xbf16, #tpu.memory_space<vmem>>, vector<128x128xbf16>
    %c0_5 = arith.constant 0 : index
    %c0_6 = arith.constant 0 : index
    %3 = vector.load %arg3[%c0_5, %c0_6] : memref<1x128xf32, #tpu.memory_space<vmem>>, vector<1x128xf32>
    %c0_7 = arith.constant 0 : index
    %c0_8 = arith.constant 0 : index
    %4 = vector.load %arg5[%c0_7, %c0_8] : memref<1x128xf32, #tpu.memory_space<vmem>>, vector<1x128xf32>
    %c0_9 = arith.constant 0 : index
    %c0_10 = arith.constant 0 : index
    %5 = vector.load %arg7[%c0_9, %c0_10] : memref<1x128xf32, #tpu.memory_space<vmem>>, vector<1x128xf32>
    %c0_11 = arith.constant 0 : index
    %c0_12 = arith.constant 0 : index
    %6 = vector.load %arg1[%c0_11, %c0_12] : memref<16x128xbf16, #tpu.memory_space<vmem>>, vector<16x128xbf16>
    %cst = arith.constant dense<0.000000e+00> : vector<16x128xf32>
    %7 = tpu.matmul %6, %0, %cst {dimension_numbers = #tpu.dot_dimension_numbers<[1], [0], [0], [1], [0, 0, 1, 1], [], []>} : vector<16x128xbf16>, vector<128x128xbf16>, vector<16x128xf32> -> vector<16x128xf32>
    %8 = vector.broadcast %3 : vector<1x128xf32> to vector<16x128xf32>
    %9 = arith.addf %7, %8 : vector<16x128xf32>
    %cst_13 = arith.constant 0.000000e+00 : f32
    %10 = vector.broadcast %cst_13 : f32 to vector<16x128xf32>
    %11 = arith.maximumf %9, %10 : vector<16x128xf32>
    %12 = arith.truncf %11 : vector<16x128xf32> to vector<16x128xbf16>
    %cst_14 = arith.constant dense<0.000000e+00> : vector<16x128xf32>
    %13 = tpu.matmul %12, %1, %cst_14 {dimension_numbers = #tpu.dot_dimension_numbers<[1], [0], [0], [1], [0, 0, 1, 1], [], []>} : vector<16x128xbf16>, vector<128x128xbf16>, vector<16x128xf32> -> vector<16x128xf32>
    %14 = vector.broadcast %4 : vector<1x128xf32> to vector<16x128xf32>
    %15 = arith.addf %13, %14 : vector<16x128xf32>
    %cst_15 = arith.constant 0.000000e+00 : f32
    %16 = vector.broadcast %cst_15 : f32 to vector<16x128xf32>
    %17 = arith.maximumf %15, %16 : vector<16x128xf32>
    %18 = arith.truncf %17 : vector<16x128xf32> to vector<16x128xbf16>
    %cst_16 = arith.constant dense<0.000000e+00> : vector<16x128xf32>
    %19 = tpu.matmul %18, %2, %cst_16 {dimension_numbers = #tpu.dot_dimension_numbers<[1], [0], [0], [1], [0, 0, 1, 1], [], []>} : vector<16x128xbf16>, vector<128x128xbf16>, vector<16x128xf32> -> vector<16x128xf32>
    %20 = vector.broadcast %5 : vector<1x128xf32> to vector<16x128xf32>
    %21 = arith.addf %19, %20 : vector<16x128xf32>
    %cst_17 = arith.constant dense<0xFF800000> : vector<16xf32>
    %22 = vector.multi_reduction <maximumf>, %21, %cst_17 [1] : vector<16x128xf32> to vector<16xf32>
    %23 = vector.shape_cast %22 : vector<16xf32> to vector<16x1xf32>
    %24 = vector.broadcast %23 : vector<16x1xf32> to vector<16x128xf32>
    %25 = arith.subf %21, %24 : vector<16x128xf32>
    %26 = math.exp %25 : vector<16x128xf32>
    %cst_18 = arith.constant dense<0.000000e+00> : vector<16xf32>
    %27 = vector.multi_reduction <add>, %26, %cst_18 [1] : vector<16x128xf32> to vector<16xf32>
    %28 = vector.shape_cast %27 : vector<16xf32> to vector<16x1xf32>
    %29 = tpu.reciprocal %28 {approx = true} : vector<16x1xf32> -> vector<16x1xf32>
    %30 = vector.broadcast %29 : vector<16x1xf32> to vector<16x128xf32>
    %31 = arith.mulf %26, %30 : vector<16x128xf32>
    %32 = arith.truncf %31 : vector<16x128xf32> to vector<16x128xbf16>
    %c0_19 = arith.constant 0 : index
    %c0_20 = arith.constant 0 : index
    %33 = vector.load %arg8[%c0_19, %c0_20] : memref<16x128xbf16, #tpu.memory_space<vmem>>, vector<16x128xbf16>
    tpu.vector_store %arg8[%c0_19, %c0_20], %32 {strides = array<i32>} : memref<16x128xbf16, #tpu.memory_space<vmem>>, vector<16x128xbf16>,
    return
  }
  func.func @transform_0(%arg0: i32) -> (i32, i32) {
    %c0_i32 = arith.constant 0 : i32
    %c0_i32_0 = arith.constant 0 : i32
    return %arg0, %c0_i32 : i32, i32
  }
  func.func @transform_1(%arg0: i32) -> (i32, i32) {
    %c0_i32 = arith.constant 0 : i32
    %c0_i32_0 = arith.constant 0 : i32
    %c0_i32_1 = arith.constant 0 : i32
    return %c0_i32, %c0_i32_0 : i32, i32
  }
  func.func @transform_2(%arg0: i32) -> (i32, i32) {
    %c0_i32 = arith.constant 0 : i32
    %c0_i32_0 = arith.constant 0 : i32
    %c0_i32_1 = arith.constant 0 : i32
    return %c0_i32, %c0_i32_0 : i32, i32
  }
  func.func @transform_3(%arg0: i32) -> (i32, i32) {
    %c0_i32 = arith.constant 0 : i32
    %c0_i32_0 = arith.constant 0 : i32
    %c0_i32_1 = arith.constant 0 : i32
    return %c0_i32, %c0_i32_0 : i32, i32
  }
  func.func @transform_4(%arg0: i32) -> (i32, i32) {
    %c0_i32 = arith.constant 0 : i32
    %c0_i32_0 = arith.constant 0 : i32
    %c0_i32_1 = arith.constant 0 : i32
    return %c0_i32, %c0_i32_0 : i32, i32
  }
  func.func @transform_5(%arg0: i32) -> (i32, i32) {
    %c0_i32 = arith.constant 0 : i32
    %c0_i32_0 = arith.constant 0 : i32
    %c0_i32_1 = arith.constant 0 : i32
    return %c0_i32, %c0_i32_0 : i32, i32
  }
  func.func @transform_6(%arg0: i32) -> (i32, i32) {
    %c0_i32 = arith.constant 0 : i32
    %c0_i32_0 = arith.constant 0 : i32
    %c0_i32_1 = arith.constant 0 : i32
    return %c0_i32, %c0_i32_0 : i32, i32
  }
  func.func @transform_7(%arg0: i32) -> (i32, i32) {
    %c0_i32 = arith.constant 0 : i32
    %c0_i32_0 = arith.constant 0 : i32
    return %arg0, %c0_i32 : i32, i32
  }
}

</mosaic_0001>

<llo_original>
// kernel: tpu_custom_call.1
$region0: #{tpu_custom_call.1}
  #allocation0 [shape = 'u32[]', space=smem, size = 0x4, offset = 0x4, fixed_abs, tag = 'smem constant byte address 0x4 - core index']
  #allocation1 [shape = 'u32[144,128]{1,0:T(1,128)}', space=vmem, size = 0x12000, scoped, tag = 'internal scratch']
  %s0 = inlined_call_operand.hbm [shape: bf16[16,128], index: 0, kind: input, shape index: {}]
  %s1 = inlined_call_operand.hbm [shape: bf16[128,128], index: 1, kind: input, shape index: {}]
  %s2 = inlined_call_operand.vmem [shape: f32[1,128], index: 2, kind: input, shape index: {}]
  %s3 = inlined_call_operand.hbm [shape: bf16[128,128], index: 3, kind: input, shape index: {}]
  %s4 = inlined_call_operand.vmem [shape: f32[1,128], index: 4, kind: input, shape index: {}]
  %s5 = inlined_call_operand.hbm [shape: bf16[128,128], index: 5, kind: input, shape index: {}]
  %s6 = inlined_call_operand.vmem [shape: f32[1,128], index: 6, kind: input, shape index: {}]
  %s7 = inlined_call_operand.hbm [shape: bf16[16,128], index: 7, kind: output, shape index: {}]
  %s8 = sld [smem:[#allocation0]]
  $region54: #{tpu_custom_call.1} parent=0
    _
  %s10 = ssub.s32 1, %s8
  %s11 = scalar_select 0, %s10, %s8
  $region1: #{tpu_custom_call.1} parent=0
    #allocation2 [shape = 'u8[4096]{0}', space=vmem, size = 0x1000, scoped, tag = 'input window, operand 0, single buffered']
    #allocation3 [shape = 's32[1]{0}', space=sflag, size = 0x4, scoped, tag = 'scoped memory for tpu_custom_call.1']
    #allocation4 [shape = 's32[1]{0}', space=sflag, size = 0x4, scoped, tag = 'scoped memory for tpu_custom_call.1']
    #allocation5 [shape = 'u8[32768]{0}', space=vmem, size = 0x8000, scoped, tag = 'input window, operand 1, single buffered']
    #allocation6 [shape = 's32[1]{0}', space=sflag, size = 0x4, scoped, tag = 'scoped memory for tpu_custom_call.1']
    #allocation7 [shape = 'u8[32768]{0}', space=vmem, size = 0x8000, scoped, tag = 'input window, operand 3, single buffered']
    #allocation8 [shape = 'u8[32768]{0}', space=vmem, size = 0x8000, scoped, tag = 'input window, operand 5, single buffered']
    #allocation9 [shape = 's32[1]{0}', space=sflag, size = 0x4, scoped, tag = 'scoped memory for tpu_custom_call.1']
    #allocation10 [shape = 'u8[4096]{0}', space=vmem, size = 0x1000, scoped, tag = 'output window, operand 0, single buffered']
    %12 = vsyncpa [#allocation3], 0
    %13 = vsyncpa [#allocation6], 0
    %14 = vsyncpa [#allocation9], 0
    %15 = vsyncpa [#allocation4], 0
    // Predicated region
    $region2: #{tpu_custom_call.1} parent=1 // pred_check
      _
    $region3: #{tpu_custom_call.1} parent=1 // pred_check_branch
      %17 = sbr.rel (0) target = $region5
    $region4: #{tpu_custom_call.1} parent=1 // pred_region
      %s19 = ssub.s32 128, 128
      %20 = vsyncadd [#allocation3], %s19
      %s21 = sshll.u32 [#allocation2], 4
      %s22 = int_to_ptr.vmem [resolvable:$true] %s21
      %27 = dma.hbm_to_vmem [thread:$0]  %s0, 128, %s22, [#allocation3], 64, 64, 4
    $region5: #{tpu_custom_call.1} parent=1 // pred_fallthru
      _
    // Predicated region
    $region6: #{tpu_custom_call.1} parent=1 // pred_check
      _
    $region7: #{tpu_custom_call.1} parent=1 // pred_check_branch
      %29 = sbr.rel (0) target = $region9
    $region8: #{tpu_custom_call.1} parent=1 // pred_region
      %s31 = ssub.s32 1024, 1024
      %32 = vsyncadd [#allocation6], %s31
      %s33 = sshll.u32 [#allocation5], 4
      %s34 = int_to_ptr.vmem [resolvable:$true] %s33
      %39 = dma.hbm_to_vmem [thread:$0]  %s1, 1024, %s34, [#allocation6], 64, 64, 4
    $region9: #{tpu_custom_call.1} parent=1 // pred_fallthru
      _
    // Predicated region
    $region10: #{tpu_custom_call.1} parent=1 // pred_check
      _
    $region11: #{tpu_custom_call.1} parent=1 // pred_check_branch
      %41 = sbr.rel (0) target = $region13
    $region12: #{tpu_custom_call.1} parent=1 // pred_region
      _
    $region13: #{tpu_custom_call.1} parent=1 // pred_fallthru
      _
    // Predicated region
    $region14: #{tpu_custom_call.1} parent=1 // pred_check
      _
    $region15: #{tpu_custom_call.1} parent=1 // pred_check_branch
      %43 = sbr.rel (0) target = $region17
    $region16: #{tpu_custom_call.1} parent=1 // pred_region
      %s45 = ssub.s32 1024, 1024
      %46 = vsyncadd [#allocation6], %s45
      %s47 = sshll.u32 [#allocation7], 4
      %s48 = int_to_ptr.vmem [resolvable:$true] %s47
      %53 = dma.hbm_to_vmem [thread:$0]  %s3, 1024, %s48, [#allocation6], 64, 64, 4
    $region17: #{tpu_custom_call.1} parent=1 // pred_fallthru
      _
    // Predicated region
    $region18: #{tpu_custom_call.1} parent=1 // pred_check
      _
    $region19: #{tpu_custom_call.1} parent=1 // pred_check_branch
      %55 = sbr.rel (0) target = $region21
    $region20: #{tpu_custom_call.1} parent=1 // pred_region
      _
    $region21: #{tpu_custom_call.1} parent=1 // pred_fallthru
      _
    // Predicated region
    $region22: #{tpu_custom_call.1} parent=1 // pred_check
      _
    $region23: #{tpu_custom_call.1} parent=1 // pred_check_branch
      %57 = sbr.rel (0) target = $region25
    $region24: #{tpu_custom_call.1} parent=1 // pred_region
      %s59 = ssub.s32 1024, 1024
      %60 = vsyncadd [#allocation9], %s59
      %s61 = sshll.u32 [#allocation8], 4
      %s62 = int_to_ptr.vmem [resolvable:$true] %s61
      %67 = dma.hbm_to_vmem [thread:$0]  %s5, 1024, %s62, [#allocation9], 64, 64, 4
    $region25: #{tpu_custom_call.1} parent=1 // pred_fallthru
      _
    // Predicated region
    $region26: #{tpu_custom_call.1} parent=1 // pred_check
      _
    $region27: #{tpu_custom_call.1} parent=1 // pred_check_branch
      %69 = sbr.rel (0) target = $region29
    $region28: #{tpu_custom_call.1} parent=1 // pred_region
      _
    $region29: #{tpu_custom_call.1} parent=1 // pred_fallthru
      _
    // Predicated region
    $region30: #{tpu_custom_call.1} parent=1 // pred_check
      _
    $region31: #{tpu_custom_call.1} parent=1 // pred_check_branch
      %71 = sbr.rel (0) target = $region33
    $region32: #{tpu_custom_call.1} parent=1 // pred_region
      %72 = dma.done [#allocation3], 128
    $region33: #{tpu_custom_call.1} parent=1 // pred_fallthru
      _
    // Predicated region
    $region34: #{tpu_custom_call.1} parent=1 // pred_check
      _
    $region35: #{tpu_custom_call.1} parent=1 // pred_check_branch
      %74 = sbr.rel (0) target = $region37
    $region36: #{tpu_custom_call.1} parent=1 // pred_region
      %75 = dma.done [#allocation6], 1024
    $region37: #{tpu_custom_call.1} parent=1 // pred_fallthru
      _
    // Predicated region
    $region38: #{tpu_custom_call.1} parent=1 // pred_check
      _
    $region39: #{tpu_custom_call.1} parent=1 // pred_check_branch
      %77 = sbr.rel (0) target = $region41
    $region40: #{tpu_custom_call.1} parent=1 // pred_region
      %78 = dma.done [#allocation6], 1024
    $region41: #{tpu_custom_call.1} parent=1 // pred_fallthru
      _
    // Predicated region
    $region42: #{tpu_custom_call.1} parent=1 // pred_check
      _
    $region43: #{tpu_custom_call.1} parent=1 // pred_check_branch
      %80 = sbr.rel (0) target = $region45
    $region44: #{tpu_custom_call.1} parent=1 // pred_region
      %81 = dma.done [#allocation9], 1024
    $region45: #{tpu_custom_call.1} parent=1 // pred_fallthru
      _
    %v83 = vld [vmem:[#allocation5] sm:$0xf]
    %v84 = vld [vmem:[#allocation5 + $0x4] sm:$0xf]
    %v85 = vld [vmem:[#allocation5 + $0x8] sm:$0xf]
    %v86 = vld [vmem:[#allocation5 + $0xc] sm:$0xf]
    %v87 = vld [vmem:[#allocation5 + $0x10] sm:$0xf]
    %v88 = vld [vmem:[#allocation5 + $0x14] sm:$0xf]
    %v89 = vld [vmem:[#allocation5 + $0x18] sm:$0xf]
    %v90 = vld [vmem:[#allocation5 + $0x1c] sm:$0xf]
    %v91 = vld [vmem:[#allocation5 + $0x20] sm:$0xf]
    %v92 = vld [vmem:[#allocation5 + $0x24] sm:$0xf]
    %v93 = vld [vmem:[#allocation5 + $0x28] sm:$0xf]
    %v94 = vld [vmem:[#allocation5 + $0x2c] sm:$0xf]
    %v95 = vld [vmem:[#allocation5 + $0x30] sm:$0xf]
    %v96 = vld [vmem:[#allocation5 + $0x34] sm:$0xf]
    %v97 = vld [vmem:[#allocation5 + $0x38] sm:$0xf]
    %v98 = vld [vmem:[#allocation5 + $0x3c] sm:$0xf]
    %v99 = vld [vmem:[#allocation7] sm:$0xf]
    %v100 = vld [vmem:[#allocation7 + $0x4] sm:$0xf]
    %v101 = vld [vmem:[#allocation7 + $0x8] sm:$0xf]
    %v102 = vld [vmem:[#allocation7 + $0xc] sm:$0xf]
    %v103 = vld [vmem:[#allocation7 + $0x10] sm:$0xf]
    %v104 = vld [vmem:[#allocation7 + $0x14] sm:$0xf]
    %v105 = vld [vmem:[#allocation7 + $0x18] sm:$0xf]
    %v106 = vld [vmem:[#allocation7 + $0x1c] sm:$0xf]
    %v107 = vld [vmem:[#allocation7 + $0x20] sm:$0xf]
    %v108 = vld [vmem:[#allocation7 + $0x24] sm:$0xf]
    %v109 = vld [vmem:[#allocation7 + $0x28] sm:$0xf]
    %v110 = vld [vmem:[#allocation7 + $0x2c] sm:$0xf]
    %v111 = vld [vmem:[#allocation7 + $0x30] sm:$0xf]
    %v112 = vld [vmem:[#allocation7 + $0x34] sm:$0xf]
    %v113 = vld [vmem:[#allocation7 + $0x38] sm:$0xf]
    %v114 = vld [vmem:[#allocation7 + $0x3c] sm:$0xf]
    %v115 = vld [vmem:[#allocation8] sm:$0xf]
    %v116 = vld [vmem:[#allocation8 + $0x4] sm:$0xf]
    %v117 = vld [vmem:[#allocation8 + $0x8] sm:$0xf]
    %v118 = vld [vmem:[#allocation8 + $0xc] sm:$0xf]
    %v119 = vld [vmem:[#allocation8 + $0x10] sm:$0xf]
    %v120 = vld [vmem:[#allocation8 + $0x14] sm:$0xf]
    %v121 = vld [vmem:[#allocation8 + $0x18] sm:$0xf]
    %v122 = vld [vmem:[#allocation8 + $0x1c] sm:$0xf]
    %v123 = vld [vmem:[#allocation8 + $0x20] sm:$0xf]
    %v124 = vld [vmem:[#allocation8 + $0x24] sm:$0xf]
    %v125 = vld [vmem:[#allocation8 + $0x28] sm:$0xf]
    %v126 = vld [vmem:[#allocation8 + $0x2c] sm:$0xf]
    %v127 = vld [vmem:[#allocation8 + $0x30] sm:$0xf]
    %v128 = vld [vmem:[#allocation8 + $0x34] sm:$0xf]
    %v129 = vld [vmem:[#allocation8 + $0x38] sm:$0xf]
    %v130 = vld [vmem:[#allocation8 + $0x3c] sm:$0xf]
    %v131 = vld [vmem:[%s2] sm:$0x1]
    %v132 = vld [vmem:[%s4] sm:$0x1]
    %v133 = vld [vmem:[%s6] sm:$0x1]
    %v134 = vld [vmem:[#allocation2] sm:$0xf]
    %v135 = vld [vmem:[#allocation2 + $0x4] sm:$0xf]
    %v137 = vlaneseq
    %v138 = vshrl.u32 %v137, 7
    %v139 = vsub.s32 0, %v138
    %v140 = vrot.slane %v131, %v139
    %v144 = vunpack.c.l.b16 %v134
    %v145 = vunpack.c.l.b16 %v135
    %v146 = vpack.c.b16 %v145, %v144
    %v164 = vunpack.c.l.b16 %v83
    %v165 = vunpack.c.l.b16 %v84
    %v166 = vunpack.c.l.b16 %v85
    %v167 = vunpack.c.l.b16 %v86
    %v168 = vunpack.c.l.b16 %v87
    %v169 = vunpack.c.l.b16 %v88
    %v170 = vunpack.c.l.b16 %v89
    %v171 = vunpack.c.l.b16 %v90
    %v172 = vunpack.c.l.b16 %v91
    %v173 = vunpack.c.l.b16 %v92
    %v174 = vunpack.c.l.b16 %v93
    %v175 = vunpack.c.l.b16 %v94
    %v176 = vunpack.c.l.b16 %v95
    %v177 = vunpack.c.l.b16 %v96
    %v178 = vunpack.c.l.b16 %v97
    %v179 = vunpack.c.l.b16 %v98
    %v180 = vpack.c.b16 %v165, %v164
    %v181 = vpack.c.b16 %v167, %v166
    %v182 = vpack.c.b16 %v169, %v168
    %v183 = vpack.c.b16 %v171, %v170
    %v184 = vpack.c.b16 %v173, %v172
    %v185 = vpack.c.b16 %v175, %v174
    %v186 = vpack.c.b16 %v177, %v176
    %v187 = vpack.c.b16 %v179, %v178
    %196 = vmatprep.subr.bf16.mxu0 0
    %197 = vmatpush1.bf16.msra.mxu0 %v187
    %198 = vmatprep.subr.bf16.mxu0 0
    %199 = vmatpush1.bf16.msra.mxu0 %v186
    %200 = vmatprep.subr.bf16.mxu0 0
    %201 = vmatpush1.bf16.msra.mxu0 %v185
    %202 = vmatprep.subr.bf16.mxu0 0
    %203 = vmatpush1.bf16.msra.mxu0 %v184
    %204 = vmatprep.subr.bf16.mxu0 0
    %205 = vmatpush1.bf16.msra.mxu0 %v183
    %206 = vmatprep.subr.bf16.mxu0 0
    %207 = vmatpush1.bf16.msra.mxu0 %v182
    %208 = vmatprep.subr.bf16.mxu0 0
    %209 = vmatpush1.bf16.msra.mxu0 %v181
    %210 = vmatprep.subr.bf16.mxu0 0
    %211 = vmatpush1.bf16.msra.mxu0 %v180
    %212 = vmatprep.subr.bf16.mxu0 0
    %213 = vmatpush2.bf16.msra.mxu0 0
    %214 = vmatprep.subr.bf16.mxu0 0
    %215 = vmatpush2.bf16.msra.mxu0 0
    %216 = vmatprep.subr.bf16.mxu0 0
    %217 = vmatpush2.bf16.msra.mxu0 0
    %218 = vmatprep.subr.bf16.mxu0 0
    %219 = vmatpush2.bf16.msra.mxu0 0
    %220 = vmatprep.subr.bf16.mxu0 0
    %221 = vmatpush2.bf16.msra.mxu0 0
    %222 = vmatprep.subr.bf16.mxu0 0
    %223 = vmatpush2.bf16.msra.mxu0 0
    %224 = vmatprep.subr.bf16.mxu0 0
    %225 = vmatpush2.bf16.msra.mxu0 0
    %226 = vmatprep.subr.bf16.mxu0 0
    %227 = vmatpush2.bf16.msra.mxu0 0
    %228 = vmatprep.mubr.bf16.mxu0 0
    %229 = vmatmul.mubr.bf16.gmra.mxu0 %v146
    %v230 = vpop.f32.mrf.mxu0
    %v231 = vadd.f32 %v140, %v230
    %v232 = vpop.f32.mrf.mxu0
    %v233 = vpop.f32.mrf.mxu0
    %v234 = vadd.f32 %v140, %v233
    %v235 = vpop.f32.mrf.mxu0
    %236 = vdwg.mxu0
    %v237 = vmax.f32 %v231, 0.0
    %v238 = vmax.f32 %v234, 0.0
    %v239 = vpack.c.bf16 %v238, %v237
    %v241 = vlaneseq
    %v242 = vshrl.u32 %v241, 7
    %v243 = vsub.s32 0, %v242
    %v244 = vrot.slane %v132, %v243
    %v262 = vunpack.c.l.b16 %v99
    %v263 = vunpack.c.l.b16 %v100
    %v264 = vunpack.c.l.b16 %v101
    %v265 = vunpack.c.l.b16 %v102
    %v266 = vunpack.c.l.b16 %v103
    %v267 = vunpack.c.l.b16 %v104
    %v268 = vunpack.c.l.b16 %v105
    %v269 = vunpack.c.l.b16 %v106
    %v270 = vunpack.c.l.b16 %v107
    %v271 = vunpack.c.l.b16 %v108
    %v272 = vunpack.c.l.b16 %v109
    %v273 = vunpack.c.l.b16 %v110
    %v274 = vunpack.c.l.b16 %v111
    %v275 = vunpack.c.l.b16 %v112
    %v276 = vunpack.c.l.b16 %v113
    %v277 = vunpack.c.l.b16 %v114
    %v278 = vpack.c.b16 %v263, %v262
    %v279 = vpack.c.b16 %v265, %v264
    %v280 = vpack.c.b16 %v267, %v266
    %v281 = vpack.c.b16 %v269, %v268
    %v282 = vpack.c.b16 %v271, %v270
    %v283 = vpack.c.b16 %v273, %v272
    %v284 = vpack.c.b16 %v275, %v274
    %v285 = vpack.c.b16 %v277, %v276
    %294 = vmatprep.subr.bf16.mxu0 0
    %295 = vmatpush1.bf16.msra.mxu0 %v285
    %296 = vmatprep.subr.bf16.mxu0 0
    %297 = vmatpush1.bf16.msra.mxu0 %v284
    %298 = vmatprep.subr.bf16.mxu0 0
    %299 = vmatpush1.bf16.msra.mxu0 %v283
    %300 = vmatprep.subr.bf16.mxu0 0
    %301 = vmatpush1.bf16.msra.mxu0 %v282
    %302 = vmatprep.subr.bf16.mxu0 0
    %303 = vmatpush1.bf16.msra.mxu0 %v281
    %304 = vmatprep.subr.bf16.mxu0 0
    %305 = vmatpush1.bf16.msra.mxu0 %v280
    %306 = vmatprep.subr.bf16.mxu0 0
    %307 = vmatpush1.bf16.msra.mxu0 %v279
    %308 = vmatprep.subr.bf16.mxu0 0
    %309 = vmatpush1.bf16.msra.mxu0 %v278
    %310 = vmatprep.subr.bf16.mxu0 0
    %311 = vmatpush2.bf16.msra.mxu0 0
    %312 = vmatprep.subr.bf16.mxu0 0
    %313 = vmatpush2.bf16.msra.mxu0 0
    %314 = vmatprep.subr.bf16.mxu0 0
    %315 = vmatpush2.bf16.msra.mxu0 0
    %316 = vmatprep.subr.bf16.mxu0 0
    %317 = vmatpush2.bf16.msra.mxu0 0
    %318 = vmatprep.subr.bf16.mxu0 0
    %319 = vmatpush2.bf16.msra.mxu0 0
    %320 = vmatprep.subr.bf16.mxu0 0
    %321 = vmatpush2.bf16.msra.mxu0 0
    %322 = vmatprep.subr.bf16.mxu0 0
    %323 = vmatpush2.bf16.msra.mxu0 0
    %324 = vmatprep.subr.bf16.mxu0 0
    %325 = vmatpush2.bf16.msra.mxu0 0
    %326 = vmatprep.mubr.bf16.mxu0 0
    %327 = vmatmul.mubr.bf16.gmra.mxu0 %v239
    %v328 = vpop.f32.mrf.mxu0
    %v329 = vadd.f32 %v244, %v328
    %v330 = vpop.f32.mrf.mxu0
    %v331 = vpop.f32.mrf.mxu0
    %v332 = vadd.f32 %v244, %v331
    %v333 = vpop.f32.mrf.mxu0
    %334 = vdwg.mxu0
    %v335 = vmax.f32 %v329, 0.0
    %v336 = vmax.f32 %v332, 0.0
    %v337 = vpack.c.bf16 %v336, %v335
    %v339 = vlaneseq
    %v340 = vshrl.u32 %v339, 7
    %v341 = vsub.s32 0, %v340
    %v342 = vrot.slane %v133, %v341
    %v360 = vunpack.c.l.b16 %v115
    %v361 = vunpack.c.l.b16 %v116
    %v362 = vunpack.c.l.b16 %v117
    %v363 = vunpack.c.l.b16 %v118
    %v364 = vunpack.c.l.b16 %v119
    %v365 = vunpack.c.l.b16 %v120
    %v366 = vunpack.c.l.b16 %v121
    %v367 = vunpack.c.l.b16 %v122
    %v368 = vunpack.c.l.b16 %v123
    %v369 = vunpack.c.l.b16 %v124
    %v370 = vunpack.c.l.b16 %v125
    %v371 = vunpack.c.l.b16 %v126
    %v372 = vunpack.c.l.b16 %v127
    %v373 = vunpack.c.l.b16 %v128
    %v374 = vunpack.c.l.b16 %v129
    %v375 = vunpack.c.l.b16 %v130
    %v376 = vpack.c.b16 %v361, %v360
    %v377 = vpack.c.b16 %v363, %v362
    %v378 = vpack.c.b16 %v365, %v364
    %v379 = vpack.c.b16 %v367, %v366
    %v380 = vpack.c.b16 %v369, %v368
    %v381 = vpack.c.b16 %v371, %v370
    %v382 = vpack.c.b16 %v373, %v372
    %v383 = vpack.c.b16 %v375, %v374
    %392 = vmatprep.subr.bf16.mxu0 0
    %393 = vmatpush1.bf16.msra.mxu0 %v383
    %394 = vmatprep.subr.bf16.mxu0 0
    %395 = vmatpush1.bf16.msra.mxu0 %v382
    %396 = vmatprep.subr.bf16.mxu0 0
    %397 = vmatpush1.bf16.msra.mxu0 %v381
    %398 = vmatprep.subr.bf16.mxu0 0
    %399 = vmatpush1.bf16.msra.mxu0 %v380
    %400 = vmatprep.subr.bf16.mxu0 0
    %401 = vmatpush1.bf16.msra.mxu0 %v379
    %402 = vmatprep.subr.bf16.mxu0 0
    %403 = vmatpush1.bf16.msra.mxu0 %v378
    %404 = vmatprep.subr.bf16.mxu0 0
    %405 = vmatpush1.bf16.msra.mxu0 %v377
    %406 = vmatprep.subr.bf16.mxu0 0
    %407 = vmatpush1.bf16.msra.mxu0 %v376
    %408 = vmatprep.subr.bf16.mxu0 0
    %409 = vmatpush2.bf16.msra.mxu0 0
    %410 = vmatprep.subr.bf16.mxu0 0
    %411 = vmatpush2.bf16.msra.mxu0 0
    %412 = vmatprep.subr.bf16.mxu0 0
    %413 = vmatpush2.bf16.msra.mxu0 0
    %414 = vmatprep.subr.bf16.mxu0 0
    %415 = vmatpush2.bf16.msra.mxu0 0
    %416 = vmatprep.subr.bf16.mxu0 0
    %417 = vmatpush2.bf16.msra.mxu0 0
    %418 = vmatprep.subr.bf16.mxu0 0
    %419 = vmatpush2.bf16.msra.mxu0 0
    %420 = vmatprep.subr.bf16.mxu0 0
    %421 = vmatpush2.bf16.msra.mxu0 0
    %422 = vmatprep.subr.bf16.mxu0 0
    %423 = vmatpush2.bf16.msra.mxu0 0
    %424 = vmatprep.mubr.bf16.mxu0 0
    %425 = vmatmul.mubr.bf16.gmra.mxu0 %v337
    %v426 = vpop.f32.mrf.mxu0
    %v427 = vadd.f32 %v342, %v426
    %v428 = vpop.f32.mrf.mxu0
    %v429 = vpop.f32.mrf.mxu0
    %v430 = vadd.f32 %v342, %v429
    %v431 = vpop.f32.mrf.mxu0
    %432 = vdwg.mxu0
    %433 = vmax.xlane.f32.xlu0 %v427
    %v434 = vpop.xlane.xlu0 %433
    %435 = vmax.xlane.f32.xlu0 %v430
    %v436 = vpop.xlane.xlu0 %435
    %v437 = vsub.f32 %v427, %v434
    %v438 = vsub.f32 %v430, %v436
    %v439 = vmul.f32 %v437, 1.442695
    %v440 = vpow.pop %v439
    %v441 = vmul.f32 %v438, 1.442695
    %v442 = vpow.pop %v441
    %443 = vadd.xlane.f32.xlu0 %v440
    %v444 = vpop.xlane.xlu0 %443
    %445 = vadd.xlane.f32.xlu0 %v442
    %v446 = vpop.xlane.xlu0 %445
    %v447 = vrcp.pop %v444
    %v448 = vrcp.pop %v446
    %v449 = vmul.f32 %v440, %v447
    %v450 = vmul.f32 %v442, %v448
    %v451 = vpack.c.bf16 %v450, %v449
    %v453 = vunpack.c.l.b16 %v451
    %v454 = vunpack.c.h.b16 %v451
    %v455 = vpack.c.b16 %v453, %v453
    %v456 = vpack.c.b16 %v454, %v454
    %459 = vst [vmem:[#allocation10] sm:$0xf] %v455
    %460 = vst [vmem:[#allocation10 + $0x4] sm:$0xf] %v456
    // Predicated region
    $region46: #{tpu_custom_call.1} parent=1 // pred_check
      _
    $region47: #{tpu_custom_call.1} parent=1 // pred_check_branch
      %462 = sbr.rel (0) target = $region49
    $region48: #{tpu_custom_call.1} parent=1 // pred_region
      %s464 = ssub.s32 128, 128
      %465 = vsyncadd [#allocation4], %s464
      %s466 = sshll.u32 [#allocation10], 4
      %s467 = int_to_ptr.vmem [resolvable:$true] %s466
      %472 = dma.vmem_to_hbm [thread:$0]  %s467, 128, %s7, [#allocation4], 64, 64, 4
    $region49: #{tpu_custom_call.1} parent=1 // pred_fallthru
      _
    // Predicated region
    $region50: #{tpu_custom_call.1} parent=1 // pred_check
      _
    $region51: #{tpu_custom_call.1} parent=1 // pred_check_branch
      %474 = sbr.rel (0) target = $region53
    $region52: #{tpu_custom_call.1} parent=1 // pred_region
      %475 = dma.done [#allocation4], 128
    $region53: #{tpu_custom_call.1} parent=1 // pred_fallthru
      _
    %476 = vsyncpa [#allocation3], 1
    %477 = vsyncpa [#allocation6], 1
    %478 = vsyncpa [#allocation9], 1
    %479 = vsyncpa [#allocation4], 1

// kernel: tpu_custom_call.1
$region0: #{tpu_custom_call.1}
  #allocation0 [shape = 'u32[]', space=smem, size = 0x4, offset = 0x4, fixed_abs, tag = 'smem constant byte address 0x4 - core index']
  #allocation1 [shape = 'u32[144,128]{1,0:T(1,128)}', space=vmem, size = 0x12000, scoped, tag = 'internal scratch']
  %s0 = inlined_call_operand.hbm [shape: bf16[16,128], index: 0, kind: input, shape index: {}]
  %s1 = inlined_call_operand.hbm [shape: bf16[128,128], index: 1, kind: input, shape index: {}]
  %s2 = inlined_call_operand.vmem [shape: f32[1,128], index: 2, kind: input, shape index: {}]
  %s3 = inlined_call_operand.hbm [shape: bf16[128,128], index: 3, kind: input, shape index: {}]
  %s4 = inlined_call_operand.vmem [shape: f32[1,128], index: 4, kind: input, shape index: {}]
  %s5 = inlined_call_operand.hbm [shape: bf16[128,128], index: 5, kind: input, shape index: {}]
  %s6 = inlined_call_operand.vmem [shape: f32[1,128], index: 6, kind: input, shape index: {}]
  %s7 = inlined_call_operand.hbm [shape: bf16[16,128], index: 7, kind: output, shape index: {}]
  %s8 = sld [smem:[#allocation0]]
  $region54: #{tpu_custom_call.1} parent=0
    _
  %s10 = ssub.s32 1, %s8
  %s11 = scalar_select 0, %s10, %s8
  $region1: #{tpu_custom_call.1} parent=0
    #allocation2 [shape = 'u8[4096]{0}', space=vmem, size = 0x1000, scoped, tag = 'input window, operand 0, single buffered']
    #allocation3 [shape = 's32[1]{0}', space=sflag, size = 0x4, scoped, tag = 'scoped memory for tpu_custom_call.1']
    #allocation4 [shape = 's32[1]{0}', space=sflag, size = 0x4, scoped, tag = 'scoped memory for tpu_custom_call.1']
    #allocation5 [shape = 'u8[32768]{0}', space=vmem, size = 0x8000, scoped, tag = 'input window, operand 1, single buffered']
    #allocation6 [shape = 's32[1]{0}', space=sflag, size = 0x4, scoped, tag = 'scoped memory for tpu_custom_call.1']
    #allocation7 [shape = 'u8[32768]{0}', space=vmem, size = 0x8000, scoped, tag = 'input window, operand 3, single buffered']
    #allocation8 [shape = 'u8[32768]{0}', space=vmem, size = 0x8000, scoped, tag = 'input window, operand 5, single buffered']
    #allocation9 [shape = 's32[1]{0}', space=sflag, size = 0x4, scoped, tag = 'scoped memory for tpu_custom_call.1']
    #allocation10 [shape = 'u8[4096]{0}', space=vmem, size = 0x1000, scoped, tag = 'output window, operand 0, single buffered']
    %12 = vsyncpa [#allocation3], 0
    %13 = vsyncpa [#allocation6], 0
    %14 = vsyncpa [#allocation9], 0
    %15 = vsyncpa [#allocation4], 0
    // Predicated region
    $region2: #{tpu_custom_call.1} parent=1 // pred_check
      _
    $region3: #{tpu_custom_call.1} parent=1 // pred_check_branch
      %17 = sbr.rel (0) target = $region5
    $region4: #{tpu_custom_call.1} parent=1 // pred_region
      %s19 = ssub.s32 128, 128
      %20 = vsyncadd [#allocation3], %s19
      %s21 = sshll.u32 [#allocation2], 4
      %s22 = int_to_ptr.vmem [resolvable:$true] %s21
      %27 = dma.hbm_to_vmem [thread:$0]  %s0, 128, %s22, [#allocation3], 64, 64, 4
    $region5: #{tpu_custom_call.1} parent=1 // pred_fallthru
      _
    // Predicated region
    $region6: #{tpu_custom_call.1} parent=1 // pred_check
      _
    $region7: #{tpu_custom_call.1} parent=1 // pred_check_branch
      %29 = sbr.rel (0) target = $region9
    $region8: #{tpu_custom_call.1} parent=1 // pred_region
      %s31 = ssub.s32 1024, 1024
      %32 = vsyncadd [#allocation6], %s31
      %s33 = sshll.u32 [#allocation5], 4
      %s34 = int_to_ptr.vmem [resolvable:$true] %s33
      %39 = dma.hbm_to_vmem [thread:$0]  %s1, 1024, %s34, [#allocation6], 64, 64, 4
    $region9: #{tpu_custom_call.1} parent=1 // pred_fallthru
      _
    // Predicated region
    $region10: #{tpu_custom_call.1} parent=1 // pred_check
      _
    $region11: #{tpu_custom_call.1} parent=1 // pred_check_branch
      %41 = sbr.rel (0) target = $region13
    $region12: #{tpu_custom_call.1} parent=1 // pred_region
      _
    $region13: #{tpu_custom_call.1} parent=1 // pred_fallthru
      _
    // Predicated region
    $region14: #{tpu_custom_call.1} parent=1 // pred_check
      _
    $region15: #{tpu_custom_call.1} parent=1 // pred_check_branch
      %43 = sbr.rel (0) target = $region17
    $region16: #{tpu_custom_call.1} parent=1 // pred_region
      %s45 = ssub.s32 1024, 1024
      %46 = vsyncadd [#allocation6], %s45
      %s47 = sshll.u32 [#allocation7], 4
      %s48 = int_to_ptr.vmem [resolvable:$true] %s47
      %53 = dma.hbm_to_vmem [thread:$0]  %s3, 1024, %s48, [#allocation6], 64, 64, 4
    $region17: #{tpu_custom_call.1} parent=1 // pred_fallthru
      _
    // Predicated region
    $region18: #{tpu_custom_call.1} parent=1 // pred_check
      _
    $region19: #{tpu_custom_call.1} parent=1 // pred_check_branch
      %55 = sbr.rel (0) target = $region21
    $region20: #{tpu_custom_call.1} parent=1 // pred_region
      _
    $region21: #{tpu_custom_call.1} parent=1 // pred_fallthru
      _
    // Predicated region
    $region22: #{tpu_custom_call.1} parent=1 // pred_check
      _
    $region23: #{tpu_custom_call.1} parent=1 // pred_check_branch
      %57 = sbr.rel (0) target = $region25
    $region24: #{tpu_custom_call.1} parent=1 // pred_region
      %s59 = ssub.s32 1024, 1024
      %60 = vsyncadd [#allocation9], %s59
      %s61 = sshll.u32 [#allocation8], 4
      %s62 = int_to_ptr.vmem [resolvable:$true] %s61
      %67 = dma.hbm_to_vmem [thread:$0]  %s5, 1024, %s62, [#allocation9], 64, 64, 4
    $region25: #{tpu_custom_call.1} parent=1 // pred_fallthru
      _
    // Predicated region
    $region26: #{tpu_custom_call.1} parent=1 // pred_check
      _
    $region27: #{tpu_custom_call.1} parent=1 // pred_check_branch
      %69 = sbr.rel (0) target = $region29
    $region28: #{tpu_custom_call.1} parent=1 // pred_region
      _
    $region29: #{tpu_custom_call.1} parent=1 // pred_fallthru
      _
    // Predicated region
    $region30: #{tpu_custom_call.1} parent=1 // pred_check
      _
    $region31: #{tpu_custom_call.1} parent=1 // pred_check_branch
      %71 = sbr.rel (0) target = $region33
    $region32: #{tpu_custom_call.1} parent=1 // pred_region
      %72 = dma.done [#allocation3], 128
    $region33: #{tpu_custom_call.1} parent=1 // pred_fallthru
      _
    // Predicated region
    $region34: #{tpu_custom_call.1} parent=1 // pred_check
      _
    $region35: #{tpu_custom_call.1} parent=1 // pred_check_branch
      %74 = sbr.rel (0) target = $region37
    $region36: #{tpu_custom_call.1} parent=1 // pred_region
      %75 = dma.done [#allocation6], 1024
    $region37: #{tpu_custom_call.1} parent=1 // pred_fallthru
      _
    // Predicated region
    $region38: #{tpu_custom_call.1} parent=1 // pred_check
      _
    $region39: #{tpu_custom_call.1} parent=1 // pred_check_branch
      %77 = sbr.rel (0) target = $region41
    $region40: #{tpu_custom_call.1} parent=1 // pred_region
      %78 = dma.done [#allocation6], 1024
    $region41: #{tpu_custom_call.1} parent=1 // pred_fallthru
      _
    // Predicated region
    $region42: #{tpu_custom_call.1} parent=1 // pred_check
      _
    $region43: #{tpu_custom_call.1} parent=1 // pred_check_branch
      %80 = sbr.rel (0) target = $region45
    $region44: #{tpu_custom_call.1} parent=1 // pred_region
      %81 = dma.done [#allocation9], 1024
    $region45: #{tpu_custom_call.1} parent=1 // pred_fallthru
      _
    %v83 = vld [vmem:[#allocation5] sm:$0xf]
    %v84 = vld [vmem:[#allocation5 + $0x4] sm:$0xf]
    %v85 = vld [vmem:[#allocation5 + $0x8] sm:$0xf]
    %v86 = vld [vmem:[#allocation5 + $0xc] sm:$0xf]
    %v87 = vld [vmem:[#allocation5 + $0x10] sm:$0xf]
    %v88 = vld [vmem:[#allocation5 + $0x14] sm:$0xf]
    %v89 = vld [vmem:[#allocation5 + $0x18] sm:$0xf]
    %v90 = vld [vmem:[#allocation5 + $0x1c] sm:$0xf]
    %v91 = vld [vmem:[#allocation5 + $0x20] sm:$0xf]
    %v92 = vld [vmem:[#allocation5 + $0x24] sm:$0xf]
    %v93 = vld [vmem:[#allocation5 + $0x28] sm:$0xf]
    %v94 = vld [vmem:[#allocation5 + $0x2c] sm:$0xf]
    %v95 = vld [vmem:[#allocation5 + $0x30] sm:$0xf]
    %v96 = vld [vmem:[#allocation5 + $0x34] sm:$0xf]
    %v97 = vld [vmem:[#allocation5 + $0x38] sm:$0xf]
    %v98 = vld [vmem:[#allocation5 + $0x3c] sm:$0xf]
    %v99 = vld [vmem:[#allocation7] sm:$0xf]
    %v100 = vld [vmem:[#allocation7 + $0x4] sm:$0xf]
    %v101 = vld [vmem:[#allocation7 + $0x8] sm:$0xf]
    %v102 = vld [vmem:[#allocation7 + $0xc] sm:$0xf]
    %v103 = vld [vmem:[#allocation7 + $0x10] sm:$0xf]
    %v104 = vld [vmem:[#allocation7 + $0x14] sm:$0xf]
    %v105 = vld [vmem:[#allocation7 + $0x18] sm:$0xf]
    %v106 = vld [vmem:[#allocation7 + $0x1c] sm:$0xf]
    %v107 = vld [vmem:[#allocation7 + $0x20] sm:$0xf]
    %v108 = vld [vmem:[#allocation7 + $0x24] sm:$0xf]
    %v109 = vld [vmem:[#allocation7 + $0x28] sm:$0xf]
    %v110 = vld [vmem:[#allocation7 + $0x2c] sm:$0xf]
    %v111 = vld [vmem:[#allocation7 + $0x30] sm:$0xf]
    %v112 = vld [vmem:[#allocation7 + $0x34] sm:$0xf]
    %v113 = vld [vmem:[#allocation7 + $0x38] sm:$0xf]
    %v114 = vld [vmem:[#allocation7 + $0x3c] sm:$0xf]
    %v115 = vld [vmem:[#allocation8] sm:$0xf]
    %v116 = vld [vmem:[#allocation8 + $0x4] sm:$0xf]
    %v117 = vld [vmem:[#allocation8 + $0x8] sm:$0xf]
    %v118 = vld [vmem:[#allocation8 + $0xc] sm:$0xf]
    %v119 = vld [vmem:[#allocation8 + $0x10] sm:$0xf]
    %v120 = vld [vmem:[#allocation8 + $0x14] sm:$0xf]
    %v121 = vld [vmem:[#allocation8 + $0x18] sm:$0xf]
    %v122 = vld [vmem:[#allocation8 + $0x1c] sm:$0xf]
    %v123 = vld [vmem:[#allocation8 + $0x20] sm:$0xf]
    %v124 = vld [vmem:[#allocation8 + $0x24] sm:$0xf]
    %v125 = vld [vmem:[#allocation8 + $0x28] sm:$0xf]
    %v126 = vld [vmem:[#allocation8 + $0x2c] sm:$0xf]
    %v127 = vld [vmem:[#allocation8 + $0x30] sm:$0xf]
    %v128 = vld [vmem:[#allocation8 + $0x34] sm:$0xf]
    %v129 = vld [vmem:[#allocation8 + $0x38] sm:$0xf]
    %v130 = vld [vmem:[#allocation8 + $0x3c] sm:$0xf]
    %v131 = vld [vmem:[%s2] sm:$0x1]
    %v132 = vld [vmem:[%s4] sm:$0x1]
    %v133 = vld [vmem:[%s6] sm:$0x1]
    %v134 = vld [vmem:[#allocation2] sm:$0xf]
    %v135 = vld [vmem:[#allocation2 + $0x4] sm:$0xf]
    %v137 = vlaneseq
    %v138 = vshrl.u32 %v137, 7
    %v139 = vsub.s32 0, %v138
    %v140 = vrot.slane %v131, %v139
    %v144 = vunpack.c.l.b16 %v134
    %v145 = vunpack.c.l.b16 %v135
    %v146 = vpack.c.b16 %v145, %v144
    %v164 = vunpack.c.l.b16 %v83
    %v165 = vunpack.c.l.b16 %v84
    %v166 = vunpack.c.l.b16 %v85
    %v167 = vunpack.c.l.b16 %v86
    %v168 = vunpack.c.l.b16 %v87
    %v169 = vunpack.c.l.b16 %v88
    %v170 = vunpack.c.l.b16 %v89
    %v171 = vunpack.c.l.b16 %v90
    %v172 = vunpack.c.l.b16 %v91
    %v173 = vunpack.c.l.b16 %v92
    %v174 = vunpack.c.l.b16 %v93
    %v175 = vunpack.c.l.b16 %v94
    %v176 = vunpack.c.l.b16 %v95
    %v177 = vunpack.c.l.b16 %v96
    %v178 = vunpack.c.l.b16 %v97
    %v179 = vunpack.c.l.b16 %v98
    %v180 = vpack.c.b16 %v165, %v164
    %v181 = vpack.c.b16 %v167, %v166
    %v182 = vpack.c.b16 %v169, %v168
    %v183 = vpack.c.b16 %v171, %v170
    %v184 = vpack.c.b16 %v173, %v172
    %v185 = vpack.c.b16 %v175, %v174
    %v186 = vpack.c.b16 %v177, %v176
    %v187 = vpack.c.b16 %v179, %v178
    %196 = vmatprep.subr.bf16.mxu0 0
    %197 = vmatpush1.bf16.msra.mxu0 %v187
    %198 = vmatprep.subr.bf16.mxu0 0
    %199 = vmatpush1.bf16.msra.mxu0 %v186
    %200 = vmatprep.subr.bf16.mxu0 0
    %201 = vmatpush1.bf16.msra.mxu0 %v185
    %202 = vmatprep.subr.bf16.mxu0 0
    %203 = vmatpush1.bf16.msra.mxu0 %v184
    %204 = vmatprep.subr.bf16.mxu0 0
    %205 = vmatpush1.bf16.msra.mxu0 %v183
    %206 = vmatprep.subr.bf16.mxu0 0
    %207 = vmatpush1.bf16.msra.mxu0 %v182
    %208 = vmatprep.subr.bf16.mxu0 0
    %209 = vmatpush1.bf16.msra.mxu0 %v181
    %210 = vmatprep.subr.bf16.mxu0 0
    %211 = vmatpush1.bf16.msra.mxu0 %v180
    %212 = vmatprep.subr.bf16.mxu0 0
    %213 = vmatpush2.bf16.msra.mxu0 0
    %214 = vmatprep.subr.bf16.mxu0 0
    %215 = vmatpush2.bf16.msra.mxu0 0
    %216 = vmatprep.subr.bf16.mxu0 0
    %217 = vmatpush2.bf16.msra.mxu0 0
    %218 = vmatprep.subr.bf16.mxu0 0
    %219 = vmatpush2.bf16.msra.mxu0 0
    %220 = vmatprep.subr.bf16.mxu0 0
    %221 = vmatpush2.bf16.msra.mxu0 0
    %222 = vmatprep.subr.bf16.mxu0 0
    %223 = vmatpush2.bf16.msra.mxu0 0
    %224 = vmatprep.subr.bf16.mxu0 0
    %225 = vmatpush2.bf16.msra.mxu0 0
    %226 = vmatprep.subr.bf16.mxu0 0
    %227 = vmatpush2.bf16.msra.mxu0 0
    %228 = vmatprep.mubr.bf16.mxu0 0
    %229 = vmatmul.mubr.bf16.gmra.mxu0 %v146
    %v230 = vpop.f32.mrf.mxu0
    %v231 = vadd.f32 %v140, %v230
    %v232 = vpop.f32.mrf.mxu0
    %v233 = vpop.f32.mrf.mxu0
    %v234 = vadd.f32 %v140, %v233
    %v235 = vpop.f32.mrf.mxu0
    %236 = vdwg.mxu0
    %v237 = vmax.f32 %v231, 0.0
    %v238 = vmax.f32 %v234, 0.0
    %v239 = vpack.c.bf16 %v238, %v237
    %v241 = vlaneseq
    %v242 = vshrl.u32 %v241, 7
    %v243 = vsub.s32 0, %v242
    %v244 = vrot.slane %v132, %v243
    %v262 = vunpack.c.l.b16 %v99
    %v263 = vunpack.c.l.b16 %v100
    %v264 = vunpack.c.l.b16 %v101
    %v265 = vunpack.c.l.b16 %v102
    %v266 = vunpack.c.l.b16 %v103
    %v267 = vunpack.c.l.b16 %v104
    %v268 = vunpack.c.l.b16 %v105
    %v269 = vunpack.c.l.b16 %v106
    %v270 = vunpack.c.l.b16 %v107
    %v271 = vunpack.c.l.b16 %v108
    %v272 = vunpack.c.l.b16 %v109
    %v273 = vunpack.c.l.b16 %v110
    %v274 = vunpack.c.l.b16 %v111
    %v275 = vunpack.c.l.b16 %v112
    %v276 = vunpack.c.l.b16 %v113
    %v277 = vunpack.c.l.b16 %v114
    %v278 = vpack.c.b16 %v263, %v262
    %v279 = vpack.c.b16 %v265, %v264
    %v280 = vpack.c.b16 %v267, %v266
    %v281 = vpack.c.b16 %v269, %v268
    %v282 = vpack.c.b16 %v271, %v270
    %v283 = vpack.c.b16 %v273, %v272
    %v284 = vpack.c.b16 %v275, %v274
    %v285 = vpack.c.b16 %v277, %v276
    %294 = vmatprep.subr.bf16.mxu0 0
    %295 = vmatpush1.bf16.msra.mxu0 %v285
    %296 = vmatprep.subr.bf16.mxu0 0
    %297 = vmatpush1.bf16.msra.mxu0 %v284
    %298 = vmatprep.subr.bf16.mxu0 0
    %299 = vmatpush1.bf16.msra.mxu0 %v283
    %300 = vmatprep.subr.bf16.mxu0 0
    %301 = vmatpush1.bf16.msra.mxu0 %v282
    %302 = vmatprep.subr.bf16.mxu0 0
    %303 = vmatpush1.bf16.msra.mxu0 %v281
    %304 = vmatprep.subr.bf16.mxu0 0
    %305 = vmatpush1.bf16.msra.mxu0 %v280
    %306 = vmatprep.subr.bf16.mxu0 0
    %307 = vmatpush1.bf16.msra.mxu0 %v279
    %308 = vmatprep.subr.bf16.mxu0 0
    %309 = vmatpush1.bf16.msra.mxu0 %v278
    %310 = vmatprep.subr.bf16.mxu0 0
    %311 = vmatpush2.bf16.msra.mxu0 0
    %312 = vmatprep.subr.bf16.mxu0 0
    %313 = vmatpush2.bf16.msra.mxu0 0
    %314 = vmatprep.subr.bf16.mxu0 0
    %315 = vmatpush2.bf16.msra.mxu0 0
    %316 = vmatprep.subr.bf16.mxu0 0
    %317 = vmatpush2.bf16.msra.mxu0 0
    %318 = vmatprep.subr.bf16.mxu0 0
    %319 = vmatpush2.bf16.msra.mxu0 0
    %320 = vmatprep.subr.bf16.mxu0 0
    %321 = vmatpush2.bf16.msra.mxu0 0
    %322 = vmatprep.subr.bf16.mxu0 0
    %323 = vmatpush2.bf16.msra.mxu0 0
    %324 = vmatprep.subr.bf16.mxu0 0
    %325 = vmatpush2.bf16.msra.mxu0 0
    %326 = vmatprep.mubr.bf16.mxu0 0
    %327 = vmatmul.mubr.bf16.gmra.mxu0 %v239
    %v328 = vpop.f32.mrf.mxu0
    %v329 = vadd.f32 %v244, %v328
    %v330 = vpop.f32.mrf.mxu0
    %v331 = vpop.f32.mrf.mxu0
    %v332 = vadd.f32 %v244, %v331
    %v333 = vpop.f32.mrf.mxu0
    %334 = vdwg.mxu0
    %v335 = vmax.f32 %v329, 0.0
    %v336 = vmax.f32 %v332, 0.0
    %v337 = vpack.c.bf16 %v336, %v335
    %v339 = vlaneseq
    %v340 = vshrl.u32 %v339, 7
    %v341 = vsub.s32 0, %v340
    %v342 = vrot.slane %v133, %v341
    %v360 = vunpack.c.l.b16 %v115
    %v361 = vunpack.c.l.b16 %v116
    %v362 = vunpack.c.l.b16 %v117
    %v363 = vunpack.c.l.b16 %v118
    %v364 = vunpack.c.l.b16 %v119
    %v365 = vunpack.c.l.b16 %v120
    %v366 = vunpack.c.l.b16 %v121
    %v367 = vunpack.c.l.b16 %v122
    %v368 = vunpack.c.l.b16 %v123
    %v369 = vunpack.c.l.b16 %v124
    %v370 = vunpack.c.l.b16 %v125
    %v371 = vunpack.c.l.b16 %v126
    %v372 = vunpack.c.l.b16 %v127
    %v373 = vunpack.c.l.b16 %v128
    %v374 = vunpack.c.l.b16 %v129
    %v375 = vunpack.c.l.b16 %v130
    %v376 = vpack.c.b16 %v361, %v360
    %v377 = vpack.c.b16 %v363, %v362
    %v378 = vpack.c.b16 %v365, %v364
    %v379 = vpack.c.b16 %v367, %v366
    %v380 = vpack.c.b16 %v369, %v368
    %v381 = vpack.c.b16 %v371, %v370
    %v382 = vpack.c.b16 %v373, %v372
    %v383 = vpack.c.b16 %v375, %v374
    %392 = vmatprep.subr.bf16.mxu0 0
    %393 = vmatpush1.bf16.msra.mxu0 %v383
    %394 = vmatprep.subr.bf16.mxu0 0
    %395 = vmatpush1.bf16.msra.mxu0 %v382
    %396 = vmatprep.subr.bf16.mxu0 0
    %397 = vmatpush1.bf16.msra.mxu0 %v381
    %398 = vmatprep.subr.bf16.mxu0 0
    %399 = vmatpush1.bf16.msra.mxu0 %v380
    %400 = vmatprep.subr.bf16.mxu0 0
    %401 = vmatpush1.bf16.msra.mxu0 %v379
    %402 = vmatprep.subr.bf16.mxu0 0
    %403 = vmatpush1.bf16.msra.mxu0 %v378
    %404 = vmatprep.subr.bf16.mxu0 0
    %405 = vmatpush1.bf16.msra.mxu0 %v377
    %406 = vmatprep.subr.bf16.mxu0 0
    %407 = vmatpush1.bf16.msra.mxu0 %v376
    %408 = vmatprep.subr.bf16.mxu0 0
    %409 = vmatpush2.bf16.msra.mxu0 0
    %410 = vmatprep.subr.bf16.mxu0 0
    %411 = vmatpush2.bf16.msra.mxu0 0
    %412 = vmatprep.subr.bf16.mxu0 0
    %413 = vmatpush2.bf16.msra.mxu0 0
    %414 = vmatprep.subr.bf16.mxu0 0
    %415 = vmatpush2.bf16.msra.mxu0 0
    %416 = vmatprep.subr.bf16.mxu0 0
    %417 = vmatpush2.bf16.msra.mxu0 0
    %418 = vmatprep.subr.bf16.mxu0 0
    %419 = vmatpush2.bf16.msra.mxu0 0
    %420 = vmatprep.subr.bf16.mxu0 0
    %421 = vmatpush2.bf16.msra.mxu0 0
    %422 = vmatprep.subr.bf16.mxu0 0
    %423 = vmatpush2.bf16.msra.mxu0 0
    %424 = vmatprep.mubr.bf16.mxu0 0
    %425 = vmatmul.mubr.bf16.gmra.mxu0 %v337
    %v426 = vpop.f32.mrf.mxu0
    %v427 = vadd.f32 %v342, %v426
    %v428 = vpop.f32.mrf.mxu0
    %v429 = vpop.f32.mrf.mxu0
    %v430 = vadd.f32 %v342, %v429
    %v431 = vpop.f32.mrf.mxu0
    %432 = vdwg.mxu0
    %433 = vmax.xlane.f32.xlu0 %v427
    %v434 = vpop.xlane.xlu0 %433
    %435 = vmax.xlane.f32.xlu0 %v430
    %v436 = vpop.xlane.xlu0 %435
    %v437 = vsub.f32 %v427, %v434
    %v438 = vsub.f32 %v430, %v436
    %v439 = vmul.f32 %v437, 1.442695
    %v440 = vpow.pop %v439
    %v441 = vmul.f32 %v438, 1.442695
    %v442 = vpow.pop %v441
    %443 = vadd.xlane.f32.xlu0 %v440
    %v444 = vpop.xlane.xlu0 %443
    %445 = vadd.xlane.f32.xlu0 %v442
    %v446 = vpop.xlane.xlu0 %445
    %v447 = vrcp.pop %v444
    %v448 = vrcp.pop %v446
    %v449 = vmul.f32 %v440, %v447
    %v450 = vmul.f32 %v442, %v448
    %v451 = vpack.c.bf16 %v450, %v449
    %v453 = vunpack.c.l.b16 %v451
    %v454 = vunpack.c.h.b16 %v451
    %v455 = vpack.c.b16 %v453, %v453
    %v456 = vpack.c.b16 %v454, %v454
    %459 = vst [vmem:[#allocation10] sm:$0xf] %v455
    %460 = vst [vmem:[#allocation10 + $0x4] sm:$0xf] %v456
    // Predicated region
    $region46: #{tpu_custom_call.1} parent=1 // pred_check
      _
    $region47: #{tpu_custom_call.1} parent=1 // pred_check_branch
      %462 = sbr.rel (0) target = $region49
    $region48: #{tpu_custom_call.1} parent=1 // pred_region
      %s464 = ssub.s32 128, 128
      %465 = vsyncadd [#allocation4], %s464
      %s466 = sshll.u32 [#allocation10], 4
      %s467 = int_to_ptr.vmem [resolvable:$true] %s466
      %472 = dma.vmem_to_hbm [thread:$0]  %s467, 128, %s7, [#allocation4], 64, 64, 4
    $region49: #{tpu_custom_call.1} parent=1 // pred_fallthru
      _
    // Predicated region
    $region50: #{tpu_custom_call.1} parent=1 // pred_check
      _
    $region51: #{tpu_custom_call.1} parent=1 // pred_check_branch
      %474 = sbr.rel (0) target = $region53
    $region52: #{tpu_custom_call.1} parent=1 // pred_region
      %475 = dma.done [#allocation4], 128
    $region53: #{tpu_custom_call.1} parent=1 // pred_fallthru
      _
    %476 = vsyncpa [#allocation3], 1
    %477 = vsyncpa [#allocation6], 1
    %478 = vsyncpa [#allocation9], 1
    %479 = vsyncpa [#allocation4], 1

</llo_original>
